<compile_context>
chip_gen: v5e
topology: v5e:2x2
jax: 0.10.0
libtpu: 0.0.40
codegen_flags: <defaults>
</compile_context>

<pallas_src>
import functools
import math

import jax
import jax.numpy as jnp
from jax import lax
from jax.experimental import pallas as pl
from jax.experimental.pallas import tpu as pltpu

_LANE = 128


def _round_up(n, m):
    return ((n + m - 1) // m) * m


def _vmem_limit(need_bytes):
    # Explicit scoped-VMEM budget from the actual block sizes (+ headroom), kept under
    # v7x's 64 MiB physical VMEM.
    return int(min(max(need_bytes + (4 << 20), 8 << 20), 60 << 20))


def _pad_last(x, target):
    pad = target - x.shape[-1]
    if pad == 0:
        return x
    cfg = [(0, 0)] * (x.ndim - 1) + [(0, pad)]
    return jnp.pad(x, cfg)


def _pad_ch_io(w_hwio, cin_p, cout_p):
    _, _, cin, cout = w_hwio.shape
    return jnp.pad(w_hwio, ((0, 0), (0, 0), (0, cin_p - cin), (0, cout_p - cout)))


def _space_to_depth(x):
    """(N, H, W, C) -> (N, H//2, W//2, 4*C) with channel index (2*dy+dx)*C + c."""
    n, h, w, c = x.shape
    x = x.reshape(n, h // 2, 2, w // 2, 2, c)
    x = x.transpose(0, 1, 3, 2, 4, 5)
    return x.reshape(n, h // 2, w // 2, 4 * c)


# ---------------------------------------------------------------------------
# Kernels
# ---------------------------------------------------------------------------
def _conv_bias_act_kernel(x_ref, w_ref, b_ref, o_ref, acc_ref, *, K, alpha, gain, clamp):
    """KxK VALID conv (input already carries its spatial halo) + bias + lrelu + gain.

    x_ref  : (1, Ho+K-1, Wo+K-1, Cin)  NHWC block, Cin lane-padded (multiple of 128)
    w_ref  : (K, K, Cin, TCo)          weight slice for this Cout tile
    b_ref  : (1, TCo)                  f32 bias slice
    o_ref  : (1, Ho, Wo, TCo)          output block
    acc_ref: (Ho*Wo, TCo) f32          VMEM scratch accumulator
    """
    _, Ho, Wo, TCo = o_ref.shape
    Cin = x_ref.shape[-1]

    acc_ref[...] = jnp.zeros_like(acc_ref)
    # K*K taps as shifted (Ho*Wo, Cin) @ (Cin, TCo) MXU matmuls. Channels are padded to
    # the lane width, so every contraction is >=128 wide; operands stay in the
    # activation dtype (bf16-ready), accumulation is f32.
    for kh in range(K):
        for kw in range(K):
            patch = x_ref[0, kh:kh + Ho, kw:kw + Wo, :].reshape(Ho * Wo, Cin)
            acc_ref[...] += jnp.dot(patch, w_ref[kh, kw],
                                    preferred_element_type=jnp.float32)

    # f32 epilogue: bias + leaky-relu + gain (+ optional clamp), lane-dense store.
    y = acc_ref[...] + b_ref[0].astype(jnp.float32)
    if alpha != 1.0:
        y = jnp.where(y >= 0.0, y, alpha * y)
    if gain != 1.0:
        y = y * gain
    if clamp is not None:
        y = jnp.clip(y, -clamp, clamp)
    o_ref[0] = y.reshape(Ho, Wo, TCo).astype(o_ref.dtype)


def _downsample2d_kernel(z_ref, o_ref, *, f_taps):
    """[1,3,3,1] x [1,3,3,1] / 64 depthwise low-pass + 2x downsample.

    Runs on a space-to-depth input so every access is stride-1 (pure VPU work,
    channels on lanes).

    z_ref: (1, Ho+1, Wo+1, 4*C)  space-to-depth of the pad-1 input
    o_ref: (1, Ho, Wo, C)
    """
    _, Ho, Wo, C = o_ref.shape
    acc = jnp.zeros((Ho, Wo, C), jnp.float32)
    for A in range(2):
        for B in range(2):
            for dy in range(2):
                for dx in range(2):
                    g = 2 * dy + dx
                    coef = f_taps[2 * A + dy][2 * B + dx]
                    acc = acc + coef * z_ref[0, A:A + Ho, B:B + Wo,
                                             g * C:(g + 1) * C].astype(jnp.float32)
    o_ref[0] = acc.astype(o_ref.dtype)


# ---------------------------------------------------------------------------
# pallas_call wrappers
# ---------------------------------------------------------------------------
def _conv2d_valid(x, w, b, *, K, alpha, gain, clamp, cout_tile=_LANE):
    """NHWC KxK valid conv + bias + lrelu + gain. x:(N,Ho+K-1,Wo+K-1,Cin),
    w:(K,K,Cin,Cout), b:(1,Cout) f32. Cin/Cout are multiples of 128."""
    N, Hp, Wp, Cin = x.shape
    Ho, Wo = Hp - (K - 1), Wp - (K - 1)
    Cout = w.shape[-1]
    assert w.shape == (K, K, Cin, Cout) and b.shape == (1, Cout)
    assert Cin % _LANE == 0 and Cout % _LANE == 0
    tco = min(cout_tile, Cout)
    assert Cout % tco == 0

    kernel = functools.partial(_conv_bias_act_kernel, K=K, alpha=alpha, gain=gain,
                               clamp=clamp)
    dsz = x.dtype.itemsize
    blk = (Hp * Wp * Cin * dsz          # input block
           + K * K * Cin * tco * dsz    # weight tile
           + Ho * Wo * tco * dsz        # output block
           + Ho * Wo * tco * 4)         # f32 accumulator scratch
    flops = 2 * N * Ho * Wo * K * K * Cin * Cout
    bytes_accessed = (N * (Cout // tco) * Hp * Wp * Cin * dsz
                      + K * K * Cin * Cout * dsz
                      + N * Ho * Wo * Cout * dsz)

    return pl.pallas_call(
        kernel,
        out_shape=jax.ShapeDtypeStruct((N, Ho, Wo, Cout), x.dtype),
        grid_spec=pltpu.PrefetchScalarGridSpec(
            num_scalar_prefetch=0,
            grid=(N, Cout // tco),
            in_specs=[
                pl.BlockSpec((1, Hp, Wp, Cin), lambda n, j: (n, 0, 0, 0)),
                pl.BlockSpec((K, K, Cin, tco), lambda n, j: (0, 0, 0, j)),
                pl.BlockSpec((1, tco), lambda n, j: (0, j)),
            ],
            out_specs=pl.BlockSpec((1, Ho, Wo, tco), lambda n, j: (n, 0, 0, j)),
            scratch_shapes=[pltpu.VMEM((Ho * Wo, tco), jnp.float32)],
        ),
        compiler_params=pltpu.CompilerParams(
            dimension_semantics=("parallel", "parallel"),
            vmem_limit_bytes=_vmem_limit(2 * blk)),
        cost_estimate=pl.CostEstimate(flops=flops, transcendentals=0,
                                      bytes_accessed=bytes_accessed),
    )(x, w, b)


def _downsample2d(z, c_out, f_taps):
    """z: (N, Ho+1, Wo+1, 4*c_out) space-to-depth of the pad-1 input -> (N, Ho, Wo, c_out)."""
    N, Hz, Wz, C4 = z.shape
    Ho, Wo = Hz - 1, Wz - 1
    dsz = z.dtype.itemsize
    blk = Hz * Wz * C4 * dsz + Ho * Wo * c_out * dsz
    kernel = functools.partial(_downsample2d_kernel, f_taps=f_taps)
    return pl.pallas_call(
        kernel,
        out_shape=jax.ShapeDtypeStruct((N, Ho, Wo, c_out), z.dtype),
        grid_spec=pltpu.PrefetchScalarGridSpec(
            num_scalar_prefetch=0,
            grid=(N,),
            in_specs=[pl.BlockSpec((1, Hz, Wz, C4), lambda n: (n, 0, 0, 0))],
            out_specs=pl.BlockSpec((1, Ho, Wo, c_out), lambda n: (n, 0, 0, 0)),
        ),
        compiler_params=pltpu.CompilerParams(
            dimension_semantics=("parallel",),
            vmem_limit_bytes=_vmem_limit(2 * blk)),
        cost_estimate=pl.CostEstimate(flops=2 * N * Ho * Wo * c_out * 16,
                                      transcendentals=0,
                                      bytes_accessed=N * blk),
    )(z)


# ---------------------------------------------------------------------------
# Module
# ---------------------------------------------------------------------------
class EncoderResBlock:
    """JAX/Pallas re-implementation of the PyTorch EncoderResBlock forward pass."""

    LRELU_ALPHA = 0.2
    LRELU_GAIN = math.sqrt(2.0)  # bias_act 'lrelu' def_gain

    def __init__(self, img_channel, in_channel, out_channel, downsample=True, seed=0):
        self.img_channel = img_channel
        self.in_channel = in_channel
        self.out_channel = out_channel
        self.downsample = downsample

        # upfirdn2d.setup_filter([1, 3, 3, 1]): outer product, normalized to sum 1.
        f1 = jnp.array([1.0, 3.0, 3.0, 1.0], jnp.float32)
        f2 = jnp.outer(f1, f1)
        self.f2d = f2 / jnp.sum(f2)
        self.f_taps = tuple(tuple(float(a * b) / 64.0 for b in (1.0, 3.0, 3.0, 1.0))
                            for a in (1.0, 3.0, 3.0, 1.0))

        # Conv2dLayer weight_gain uses the *original* (unpadded) channel counts.
        self.wg0 = 1.0 / math.sqrt(img_channel * 1 ** 2)
        self.wg1 = 1.0 / math.sqrt(in_channel * 3 ** 2)
        self.wg2 = 1.0 / math.sqrt(in_channel * 3 ** 2)

        k = jax.random.split(jax.random.PRNGKey(seed), 6)
        # torch.randn([out, in, kh, kw]) equivalents (deterministic synthetic init).
        # Biases are random (PyTorch inits them to zero) so the bias path is exercised.
        self.w0 = jax.random.normal(k[0], (in_channel, img_channel, 1, 1), jnp.float32)
        self.b0 = 0.1 * jax.random.normal(k[1], (in_channel,), jnp.float32)
        self.w1 = jax.random.normal(k[2], (in_channel, in_channel, 3, 3), jnp.float32)
        self.b1 = 0.1 * jax.random.normal(k[3], (in_channel,), jnp.float32)
        self.w2 = jax.random.normal(k[4], (out_channel, in_channel, 3, 3), jnp.float32)
        self.b2 = 0.1 * jax.random.normal(k[5], (out_channel,), jnp.float32)

    def __call__(self, x_nchw, skip=None):
        N, C, H, W = x_nchw.shape
        assert C == self.img_channel
        dtype = x_nchw.dtype
        Ci, C1, C2 = self.img_channel, self.in_channel, self.out_channel
        Cip = _round_up(Ci, _LANE)
        C1p = _round_up(C1, _LANE)
        C2p = _round_up(C2, _LANE)
        alpha, gain = self.LRELU_ALPHA, self.LRELU_GAIN

        # ---- NCHW -> channel-padded NHWC (one boundary transpose; the internal
        #      pipeline stays lane-dense NHWC).
        x = _pad_last(jnp.transpose(x_nchw, (0, 2, 3, 1)), Cip)

        # ---- downsample2d: pad 1, 4x4 [1,3,3,1] low-pass, keep every 2nd pixel.
        #      Stride folded into channels by a wrapper-side space-to-depth.
        if self.downsample:
            assert H % 4 == 0 and W % 4 == 0
            xp = jnp.pad(x, ((0, 0), (1, 1), (1, 1), (0, 0)))
            ds = _downsample2d(_space_to_depth(xp), Cip, self.f_taps)
            input_out = jnp.transpose(ds[..., :Ci], (0, 3, 1, 2))
        else:
            assert H % 2 == 0 and W % 2 == 0
            ds = x
            input_out = x_nchw

        # ---- fromrgb: 1x1 conv + bias + lrelu * sqrt(2)
        w0 = _pad_ch_io(jnp.transpose(self.w0, (2, 3, 1, 0)) * self.wg0,
                        Cip, C1p).astype(dtype)
        b0 = _pad_last(self.b0[None, :], C1p)
        y = _conv2d_valid(ds, w0, b0, K=1, alpha=alpha, gain=gain, clamp=None)

        if skip is not None:
            y = y + _pad_last(jnp.transpose(skip.astype(dtype), (0, 2, 3, 1)), C1p)

        # ---- conv1: 3x3 same conv + bias + lrelu * sqrt(2)
        w1 = _pad_ch_io(jnp.transpose(self.w1, (2, 3, 1, 0)) * self.wg1,
                        C1p, C1p).astype(dtype)
        b1 = _pad_last(self.b1[None, :], C1p)
        y = _conv2d_valid(jnp.pad(y, ((0, 0), (1, 1), (1, 1), (0, 0))), w1, b1,
                          K=3, alpha=alpha, gain=gain, clamp=None)

        # ---- conv2 (down=2): [1,3,3,1] low-pass (pad 2) followed by a stride-2 3x3
        #      conv. Both are linear, so the low-pass is composed into an effective
        #      6x6 stride-2 weight, and the stride is folded into channels with a
        #      space-to-depth => plain 3x3 stride-1 conv on the same kernel.
        w2 = _pad_ch_io(jnp.transpose(self.w2, (2, 3, 1, 0)) * self.wg2, C1p, C2p)
        w_eff = jnp.zeros((6, 6, C1p, C2p), jnp.float32)
        for a in range(4):
            for b in range(4):
                w_eff = w_eff.at[a:a + 3, b:b + 3].add(self.f2d[a, b] * w2)
        w2s = w_eff.reshape(3, 2, 3, 2, C1p, C2p).transpose(0, 2, 1, 3, 4, 5)
        w2s = w2s.reshape(3, 3, 4 * C1p, C2p).astype(dtype)
        b2 = _pad_last(self.b2[None, :], C2p)
        yp = jnp.pad(y, ((0, 0), (2, 2), (2, 2), (0, 0)))
        y = _conv2d_valid(_space_to_depth(yp), w2s, b2, K=3,
                          alpha=alpha, gain=gain, clamp=None)

        out = jnp.transpose(y[..., :C2], (0, 3, 1, 2))
        return input_out, out


# ---------------------------------------------------------------------------
# Plain-JAX reference (lax.conv) reproducing the PyTorch forward exactly
# ---------------------------------------------------------------------------
def _encoder_resblock_ref(block, x_nchw):
    dn = ('NCHW', 'OIHW', 'NCHW')
    hp = lax.Precision.HIGHEST
    sqrt2 = math.sqrt(2.0)

    def bias_lrelu(v, bias):
        v = v + bias[None, :, None, None]
        v = jnp.where(v >= 0, v, 0.2 * v)
        return v * sqrt2

    f = block.f2d
    x = x_nchw
    if block.downsample:
        C = x.shape[1]
        fw = jnp.tile(f[None, None], (C, 1, 1, 1))
        x = lax.conv_general_dilated(x, fw, (2, 2), ((1, 1), (1, 1)),
                                     dimension_numbers=dn, feature_group_count=C,
                                     precision=hp)
    y = lax.conv_general_dilated(x, block.w0 * block.wg0, (1, 1), ((0, 0), (0, 0)),
                                 dimension_numbers=dn, precision=hp)
    y = bias_lrelu(y, block.b0)
    y = lax.conv_general_dilated(y, block.w1 * block.wg1, (1, 1), ((1, 1), (1, 1)),
                                 dimension_numbers=dn, precision=hp)
    y = bias_lrelu(y, block.b1)
    C1 = y.shape[1]
    fw1 = jnp.tile(f[None, None], (C1, 1, 1, 1))
    y = lax.conv_general_dilated(y, fw1, (1, 1), ((2, 2), (2, 2)),
                                 dimension_numbers=dn, feature_group_count=C1,
                                 precision=hp)
    y = lax.conv_general_dilated(y, block.w2 * block.wg2, (2, 2), ((0, 0), (0, 0)),
                                 dimension_numbers=dn, precision=hp)
    y = bias_lrelu(y, block.b2)
    return x, y


if __name__ == "__main__":
    key = jax.random.PRNGKey(0)
    N, img_ch, H, W = 2, 4, 16, 16
    in_ch, out_ch = 4, 8

    x = jax.random.normal(key, (N, img_ch, H, W), jnp.float32)

    block = EncoderResBlock(img_ch, in_ch, out_ch, downsample=True, seed=0)
    input_ds, out = block(x)
    input_ds, out = jax.block_until_ready((input_ds, out))

    assert input_ds.shape == (N, img_ch, H // 2, W // 2), input_ds.shape
    assert out.shape == (N, out_ch, H // 4, W // 4), out.shape

    ref_ds, ref_out = _encoder_resblock_ref(block, x)
    err_ds = float(jnp.max(jnp.abs(input_ds - ref_ds)))
    err_out = float(jnp.max(jnp.abs(out - ref_out)))
    assert jnp.allclose(input_ds, ref_ds, atol=2e-3, rtol=2e-3), err_ds
    assert jnp.allclose(out, ref_out, atol=2e-3, rtol=2e-3), err_out

    print("KERNEL_OK")
</pallas_src>

<mosaic_0001>
module attributes {stable_mosaic.version = 11 : i64} {
  func.func @_downsample2d_kernel(%arg0: i32, %arg1: memref<1x9x9x512xf32, #tpu.memory_space<vmem>>, %arg2: memref<1x8x8x128xf32, #tpu.memory_space<vmem>>) attributes {dimension_semantics = [#tpu.dimension_semantics<parallel>], iteration_bounds = array<i64: 2>, scalar_prefetch = 0 : i64, scratch_operands = 0 : i64, tpu.core_type = #tpu.core_type<tc>, window_params = [{transform_indices = @transform_0, window_bounds = array<i64: 1, 9, 9, 512>}, {transform_indices = @transform_1, window_bounds = array<i64: 1, 8, 8, 128>}]} {
    %cst = arith.constant 0.000000e+00 : f32
    %0 = vector.broadcast %cst : f32 to vector<8x8x128xf32>
    %c0 = arith.constant 0 : index
    %c0_0 = arith.constant 0 : index
    %c0_1 = arith.constant 0 : index
    %c0_2 = arith.constant 0 : index
    %1 = vector.load %arg1[%c0, %c0_0, %c0_1, %c0_2] : memref<1x9x9x512xf32, #tpu.memory_space<vmem>>, vector<1x8x8x128xf32>
    %2 = vector.shape_cast %1 : vector<1x8x8x128xf32> to vector<8x8x128xf32>
    %cst_3 = arith.constant 1.562500e-02 : f32
    %3 = vector.broadcast %cst_3 : f32 to vector<8x8x128xf32>
    %4 = arith.mulf %3, %2 : vector<8x8x128xf32>
    %5 = arith.addf %0, %4 : vector<8x8x128xf32>
    %c0_4 = arith.constant 0 : index
    %c0_5 = arith.constant 0 : index
    %c0_6 = arith.constant 0 : index
    %c128 = arith.constant 128 : index
    %6 = vector.load %arg1[%c0_4, %c0_5, %c0_6, %c128] : memref<1x9x9x512xf32, #tpu.memory_space<vmem>>, vector<1x8x8x128xf32>
    %7 = vector.shape_cast %6 : vector<1x8x8x128xf32> to vector<8x8x128xf32>
    %cst_7 = arith.constant 4.687500e-02 : f32
    %8 = vector.broadcast %cst_7 : f32 to vector<8x8x128xf32>
    %9 = arith.mulf %8, %7 : vector<8x8x128xf32>
    %10 = arith.addf %5, %9 : vector<8x8x128xf32>
    %c0_8 = arith.constant 0 : index
    %c0_9 = arith.constant 0 : index
    %c0_10 = arith.constant 0 : index
    %c256 = arith.constant 256 : index
    %11 = vector.load %arg1[%c0_8, %c0_9, %c0_10, %c256] : memref<1x9x9x512xf32, #tpu.memory_space<vmem>>, vector<1x8x8x128xf32>
    %12 = vector.shape_cast %11 : vector<1x8x8x128xf32> to vector<8x8x128xf32>
    %cst_11 = arith.constant 4.687500e-02 : f32
    %13 = vector.broadcast %cst_11 : f32 to vector<8x8x128xf32>
    %14 = arith.mulf %13, %12 : vector<8x8x128xf32>
    %15 = arith.addf %10, %14 : vector<8x8x128xf32>
    %c0_12 = arith.constant 0 : index
    %c0_13 = arith.constant 0 : index
    %c0_14 = arith.constant 0 : index
    %c384 = arith.constant 384 : index
    %16 = vector.load %arg1[%c0_12, %c0_13, %c0_14, %c384] : memref<1x9x9x512xf32, #tpu.memory_space<vmem>>, vector<1x8x8x128xf32>
    %17 = vector.shape_cast %16 : vector<1x8x8x128xf32> to vector<8x8x128xf32>
    %cst_15 = arith.constant 1.406250e-01 : f32
    %18 = vector.broadcast %cst_15 : f32 to vector<8x8x128xf32>
    %19 = arith.mulf %18, %17 : vector<8x8x128xf32>
    %20 = arith.addf %15, %19 : vector<8x8x128xf32>
    %c0_16 = arith.constant 0 : index
    %c0_17 = arith.constant 0 : index
    %c1 = arith.constant 1 : index
    %c0_18 = arith.constant 0 : index
    %21 = vector.load %arg1[%c0_16, %c0_17, %c1, %c0_18] : memref<1x9x9x512xf32, #tpu.memory_space<vmem>>, vector<1x8x8x128xf32>
    %22 = vector.shape_cast %21 : vector<1x8x8x128xf32> to vector<8x8x128xf32>
    %cst_19 = arith.constant 4.687500e-02 : f32
    %23 = vector.broadcast %cst_19 : f32 to vector<8x8x128xf32>
    %24 = arith.mulf %23, %22 : vector<8x8x128xf32>
    %25 = arith.addf %20, %24 : vector<8x8x128xf32>
    %c0_20 = arith.constant 0 : index
    %c0_21 = arith.constant 0 : index
    %c1_22 = arith.constant 1 : index
    %c128_23 = arith.constant 128 : index
    %26 = vector.load %arg1[%c0_20, %c0_21, %c1_22, %c128_23] : memref<1x9x9x512xf32, #tpu.memory_space<vmem>>, vector<1x8x8x128xf32>
    %27 = vector.shape_cast %26 : vector<1x8x8x128xf32> to vector<8x8x128xf32>
    %cst_24 = arith.constant 1.562500e-02 : f32
    %28 = vector.broadcast %cst_24 : f32 to vector<8x8x128xf32>
    %29 = arith.mulf %28, %27 : vector<8x8x128xf32>
    %30 = arith.addf %25, %29 : vector<8x8x128xf32>
    %c0_25 = arith.constant 0 : index
    %c0_26 = arith.constant 0 : index
    %c1_27 = arith.constant 1 : index
    %c256_28 = arith.constant 256 : index
    %31 = vector.load %arg1[%c0_25, %c0_26, %c1_27, %c256_28] : memref<1x9x9x512xf32, #tpu.memory_space<vmem>>, vector<1x8x8x128xf32>
    %32 = vector.shape_cast %31 : vector<1x8x8x128xf32> to vector<8x8x128xf32>
    %cst_29 = arith.constant 1.406250e-01 : f32
    %33 = vector.broadcast %cst_29 : f32 to vector<8x8x128xf32>
    %34 = arith.mulf %33, %32 : vector<8x8x128xf32>
    %35 = arith.addf %30, %34 : vector<8x8x128xf32>
    %c0_30 = arith.constant 0 : index
    %c0_31 = arith.constant 0 : index
    %c1_32 = arith.constant 1 : index
    %c384_33 = arith.constant 384 : index
    %36 = vector.load %arg1[%c0_30, %c0_31, %c1_32, %c384_33] : memref<1x9x9x512xf32, #tpu.memory_space<vmem>>, vector<1x8x8x128xf32>
    %37 = vector.shape_cast %36 : vector<1x8x8x128xf32> to vector<8x8x128xf32>
    %cst_34 = arith.constant 4.687500e-02 : f32
    %38 = vector.broadcast %cst_34 : f32 to vector<8x8x128xf32>
    %39 = arith.mulf %38, %37 : vector<8x8x128xf32>
    %40 = arith.addf %35, %39 : vector<8x8x128xf32>
    %c0_35 = arith.constant 0 : index
    %c1_36 = arith.constant 1 : index
    %c0_37 = arith.constant 0 : index
    %c0_38 = arith.constant 0 : index
    %41 = vector.load %arg1[%c0_35, %c1_36, %c0_37, %c0_38] : memref<1x9x9x512xf32, #tpu.memory_space<vmem>>, vector<1x8x8x128xf32>
    %42 = vector.shape_cast %41 : vector<1x8x8x128xf32> to vector<8x8x128xf32>
    %cst_39 = arith.constant 4.687500e-02 : f32
    %43 = vector.broadcast %cst_39 : f32 to vector<8x8x128xf32>
    %44 = arith.mulf %43, %42 : vector<8x8x128xf32>
    %45 = arith.addf %40, %44 : vector<8x8x128xf32>
    %c0_40 = arith.constant 0 : index
    %c1_41 = arith.constant 1 : index
    %c0_42 = arith.constant 0 : index
    %c128_43 = arith.constant 128 : index
    %46 = vector.load %arg1[%c0_40, %c1_41, %c0_42, %c128_43] : memref<1x9x9x512xf32, #tpu.memory_space<vmem>>, vector<1x8x8x128xf32>
    %47 = vector.shape_cast %46 : vector<1x8x8x128xf32> to vector<8x8x128xf32>
    %cst_44 = arith.constant 1.406250e-01 : f32
    %48 = vector.broadcast %cst_44 : f32 to vector<8x8x128xf32>
    %49 = arith.mulf %48, %47 : vector<8x8x128xf32>
    %50 = arith.addf %45, %49 : vector<8x8x128xf32>
    %c0_45 = arith.constant 0 : index
    %c1_46 = arith.constant 1 : index
    %c0_47 = arith.constant 0 : index
    %c256_48 = arith.constant 256 : index
    %51 = vector.load %arg1[%c0_45, %c1_46, %c0_47, %c256_48] : memref<1x9x9x512xf32, #tpu.memory_space<vmem>>, vector<1x8x8x128xf32>
    %52 = vector.shape_cast %51 : vector<1x8x8x128xf32> to vector<8x8x128xf32>
    %cst_49 = arith.constant 1.562500e-02 : f32
    %53 = vector.broadcast %cst_49 : f32 to vector<8x8x128xf32>
    %54 = arith.mulf %53, %52 : vector<8x8x128xf32>
    %55 = arith.addf %50, %54 : vector<8x8x128xf32>
    %c0_50 = arith.constant 0 : index
    %c1_51 = arith.constant 1 : index
    %c0_52 = arith.constant 0 : index
    %c384_53 = arith.constant 384 : index
    %56 = vector.load %arg1[%c0_50, %c1_51, %c0_52, %c384_53] : memref<1x9x9x512xf32, #tpu.memory_space<vmem>>, vector<1x8x8x128xf32>
    %57 = vector.shape_cast %56 : vector<1x8x8x128xf32> to vector<8x8x128xf32>
    %cst_54 = arith.constant 4.687500e-02 : f32
    %58 = vector.broadcast %cst_54 : f32 to vector<8x8x128xf32>
    %59 = arith.mulf %58, %57 : vector<8x8x128xf32>
    %60 = arith.addf %55, %59 : vector<8x8x128xf32>
    %c0_55 = arith.constant 0 : index
    %c1_56 = arith.constant 1 : index
    %c1_57 = arith.constant 1 : index
    %c0_58 = arith.constant 0 : index
    %61 = vector.load %arg1[%c0_55, %c1_56, %c1_57, %c0_58] : memref<1x9x9x512xf32, #tpu.memory_space<vmem>>, vector<1x8x8x128xf32>
    %62 = vector.shape_cast %61 : vector<1x8x8x128xf32> to vector<8x8x128xf32>
    %cst_59 = arith.constant 1.406250e-01 : f32
    %63 = vector.broadcast %cst_59 : f32 to vector<8x8x128xf32>
    %64 = arith.mulf %63, %62 : vector<8x8x128xf32>
    %65 = arith.addf %60, %64 : vector<8x8x128xf32>
    %c0_60 = arith.constant 0 : index
    %c1_61 = arith.constant 1 : index
    %c1_62 = arith.constant 1 : index
    %c128_63 = arith.constant 128 : index
    %66 = vector.load %arg1[%c0_60, %c1_61, %c1_62, %c128_63] : memref<1x9x9x512xf32, #tpu.memory_space<vmem>>, vector<1x8x8x128xf32>
    %67 = vector.shape_cast %66 : vector<1x8x8x128xf32> to vector<8x8x128xf32>
    %cst_64 = arith.constant 4.687500e-02 : f32
    %68 = vector.broadcast %cst_64 : f32 to vector<8x8x128xf32>
    %69 = arith.mulf %68, %67 : vector<8x8x128xf32>
    %70 = arith.addf %65, %69 : vector<8x8x128xf32>
    %c0_65 = arith.constant 0 : index
    %c1_66 = arith.constant 1 : index
    %c1_67 = arith.constant 1 : index
    %c256_68 = arith.constant 256 : index
    %71 = vector.load %arg1[%c0_65, %c1_66, %c1_67, %c256_68] : memref<1x9x9x512xf32, #tpu.memory_space<vmem>>, vector<1x8x8x128xf32>
    %72 = vector.shape_cast %71 : vector<1x8x8x128xf32> to vector<8x8x128xf32>
    %cst_69 = arith.constant 4.687500e-02 : f32
    %73 = vector.broadcast %cst_69 : f32 to vector<8x8x128xf32>
    %74 = arith.mulf %73, %72 : vector<8x8x128xf32>
    %75 = arith.addf %70, %74 : vector<8x8x128xf32>
    %c0_70 = arith.constant 0 : index
    %c1_71 = arith.constant 1 : index
    %c1_72 = arith.constant 1 : index
    %c384_73 = arith.constant 384 : index
    %76 = vector.load %arg1[%c0_70, %c1_71, %c1_72, %c384_73] : memref<1x9x9x512xf32, #tpu.memory_space<vmem>>, vector<1x8x8x128xf32>
    %77 = vector.shape_cast %76 : vector<1x8x8x128xf32> to vector<8x8x128xf32>
    %cst_74 = arith.constant 1.562500e-02 : f32
    %78 = vector.broadcast %cst_74 : f32 to vector<8x8x128xf32>
    %79 = arith.mulf %78, %77 : vector<8x8x128xf32>
    %80 = arith.addf %75, %79 : vector<8x8x128xf32>
    %c0_75 = arith.constant 0 : index
    %c0_76 = arith.constant 0 : index
    %c0_77 = arith.constant 0 : index
    %c0_78 = arith.constant 0 : index
    %81 = vector.load %arg2[%c0_75, %c0_76, %c0_77, %c0_78] : memref<1x8x8x128xf32, #tpu.memory_space<vmem>>, vector<1x8x8x128xf32>
    %82 = vector.shape_cast %81 : vector<1x8x8x128xf32> to vector<8x8x128xf32>
    %83 = vector.shape_cast %80 : vector<8x8x128xf32> to vector<1x8x8x128xf32>
    tpu.vector_store %arg2[%c0_75, %c0_76, %c0_77, %c0_78], %83 {strides = array<i32>} : memref<1x8x8x128xf32, #tpu.memory_space<vmem>>, vector<1x8x8x128xf32>,
    return
  }
  func.func @transform_0(%arg0: i32) -> (i32, i32, i32, i32) {
    %c0_i32 = arith.constant 0 : i32
    %c0_i32_0 = arith.constant 0 : i32
    %c0_i32_1 = arith.constant 0 : i32
    %c0_i32_2 = arith.constant 0 : i32
    return %arg0, %c0_i32, %c0_i32_0, %c0_i32_1 : i32, i32, i32, i32
  }
  func.func @transform_1(%arg0: i32) -> (i32, i32, i32, i32) {
    %c0_i32 = arith.constant 0 : i32
    %c0_i32_0 = arith.constant 0 : i32
    %c0_i32_1 = arith.constant 0 : i32
    %c0_i32_2 = arith.constant 0 : i32
    return %arg0, %c0_i32, %c0_i32_0, %c0_i32_1 : i32, i32, i32, i32
  }
}

</mosaic_0001>

<llo_original>
// kernel: tpu_custom_call.1
$region0: #{tpu_custom_call.1}
  #allocation0 [shape = 'u32[]', space=smem, size = 0x4, offset = 0x4, fixed_abs, tag = 'smem constant byte address 0x4 - core index']
  #allocation1 [shape = 'u32[72,128]{1,0:T(1,128)}', space=vmem, size = 0x9000, scoped, tag = 'internal scratch']
  %s0 = inlined_call_operand.vmem [shape: f32[2,9,9,512], index: 0, kind: input, shape index: {}]
  %s1 = inlined_call_operand.hbm [shape: f32[2,8,8,128], index: 1, kind: output, shape index: {}]
  %s2 = sld [smem:[#allocation0]]
  $region37: #{tpu_custom_call.1} parent=0
    _
  %s4 = ssub.s32 1, %s2
  %s5 = scalar_select 0, %s4, %s2
  $region1: #{tpu_custom_call.1} parent=0
    #allocation2 [shape = 'u8[65536]{0}', space=vmem, size = 0x10000, scoped, tag = 'output window, operand 0']
    #allocation3 [shape = 's32[2]{0}', space=sflag, size = 0x8, scoped, tag = 'scoped memory for tpu_custom_call.1']
    %6 = vsyncpa [#allocation3], 0
    %s7 = scalar_lea.sflag [#allocation3], 1
    %8 = vsyncpa %s7, 0
    loop: start=0, step=1, limit=4
    $region2: #{tpu_custom_call.1} parent=1 // loop_pre_header
      _
    $region3: #{tpu_custom_call.1} parent=1 // loop_header
      %s10 = sphi 0, %s14
      %p11 = scmp.ge.s32.totalorder %s10, 4
      %s20 = sphi 0, %s22
      %s23 = sphi 0, %s20
      %s24 = sphi 0, %s23
      %s40 = sphi 0, %s24
      %s46 = sphi 0, %s48
      %s49 = sphi 0, %s46
      %s50 = sphi 0, %s49
      %s66 = sphi 0, %s50
    $region4: #{tpu_custom_call.1} parent=1 // loop_header_branch
      %13 = sbr.rel (%p11) target = $region8
    $region5: #{tpu_custom_call.1} parent=1 // loop_body
      %s15 = ssub.s32 %s10, 1
      %s16 = ssub.s32 %s10, 2
      %s17 = sadd.s32 %s10, 1
      %s18 = ssub.s32 %s10, %s17
      %p19 = scmp.eq.s32.totalorder %s18, 0
      %s21 = sadd.s32 %s20, 1
      %s22 = scalar_select %p19, %s20, %s21
      %p25 = pneg %p19
      %p26 = scmp.eq.s32.totalorder %s10, 1
      %p27 = por %p25, %p26
      %p28 = scmp.ne.s32.totalorder %s20, %s23
      %p29 = scmp.eq.s32.totalorder %s10, 0
      %p30 = por %p28, %p29
      %p31 = scmp.ne.s32.totalorder %s20, %s23
      %p32 = scmp.eq.s32.totalorder %s15, 1
      %p33 = por %p31, %p32
      %p34 = scmp.ne.s32.totalorder %s23, %s24
      %p35 = scmp.eq.s32.totalorder %s15, 0
      %p36 = por %p34, %p35
      %p37 = scmp.ne.s32.totalorder %s23, %s24
      %p38 = scmp.eq.s32.totalorder %s16, 1
      %p39 = por %p37, %p38
      %p41 = scmp.ne.s32.totalorder %s24, %s40
      %p42 = scmp.eq.s32.totalorder %s16, 0
      %p43 = por %p41, %p42
      %s44 = ssub.s32 %s10, %s17
      %p45 = scmp.eq.s32.totalorder %s44, 0
      %s47 = sadd.s32 %s46, 1
      %s48 = scalar_select %p45, %s46, %s47
      %p51 = pneg %p45
      %p52 = scmp.eq.s32.totalorder %s10, 1
      %p53 = por %p51, %p52
      %p54 = scmp.ne.s32.totalorder %s46, %s49
      %p55 = scmp.eq.s32.totalorder %s10, 0
      %p56 = por %p54, %p55
      %p57 = scmp.ne.s32.totalorder %s46, %s49
      %p58 = scmp.eq.s32.totalorder %s15, 1
      %p59 = por %p57, %p58
      %p60 = scmp.ne.s32.totalorder %s49, %s50
      %p61 = scmp.eq.s32.totalorder %s15, 0
      %p62 = por %p60, %p61
      %p63 = scmp.ne.s32.totalorder %s49, %s50
      %p64 = scmp.eq.s32.totalorder %s16, 1
      %p65 = por %p63, %p64
      %p67 = scmp.ne.s32.totalorder %s50, %s66
      %p68 = scmp.eq.s32.totalorder %s16, 0
      %p69 = por %p67, %p68
      %p70 = scmp.le.s32.totalorder 1, %s10
      %p71 = scmp.lt.s32.totalorder %s10, 3
      %p72 = pnand %p70, %p71
      %p73 = pneg %p72
      // Predicated region
      $region9: #{tpu_custom_call.1} parent=5 // pred_check
        _
      $region10: #{tpu_custom_call.1} parent=5 // pred_check_branch
        %75 = sbr.rel (%p72) target = $region12
      $region11: #{tpu_custom_call.1} parent=5 // pred_region
        %s76 = ssub.s32 %s10, 1
      $region12: #{tpu_custom_call.1} parent=5 // pred_fallthru
        _
      %p77 = scmp.lt.s32.totalorder %s10, 2
      // Predicated region
      $region13: #{tpu_custom_call.1} parent=5 // pred_check
        %p78 = pneg %p77
      $region14: #{tpu_custom_call.1} parent=5 // pred_check_branch
        %80 = sbr.rel (%p78) target = $region16
      $region15: #{tpu_custom_call.1} parent=5 // pred_region
        // Predicated region
        $region17: #{tpu_custom_call.1} parent=15 // pred_check
          %p81 = pneg %p30
        $region18: #{tpu_custom_call.1} parent=15 // pred_check_branch
          %83 = sbr.rel (%p81) target = $region20
        $region19: #{tpu_custom_call.1} parent=15 // pred_region
          %p84 = scmp.lt.s32.totalorder %s10, 1
          %s85 = scalar_select %p84, %s10, 1
          %s86 = smul.addr %s85, 72
          %s87 = smul.addr %s86, 8
          %s88 = scalar_lea.vmem %s0, %s87
        $region20: #{tpu_custom_call.1} parent=15 // pred_fallthru
          _
      $region16: #{tpu_custom_call.1} parent=5 // pred_fallthru
        _
      %p89 = scmp.le.s32.totalorder 1, %s10
      %p90 = scmp.lt.s32.totalorder %s10, 3
      %p91 = pnand %p89, %p90
      %p92 = pneg %p91
      // Predicated region
      $region21: #{tpu_custom_call.1} parent=5 // pred_check
        _
      $region22: #{tpu_custom_call.1} parent=5 // pred_check_branch
        %94 = sbr.rel (%p91) target = $region24
      $region23: #{tpu_custom_call.1} parent=5 // pred_region
        %s95 = ssub.s32 %s10, 1
        %p96 = scmp.lt.s32.totalorder %s15, 1
        %s97 = scalar_select %p96, %s15, 1
        %s98 = smul.addr %s97, 72
        %s99 = smul.addr %s98, 8
        %s100 = scalar_lea.vmem %s0, %s99
        %p101 = pneg %p36
        %p102 = pneg %p33
        %p103 = pneg %p62
        %p104 = pneg %p59
        %s105 = sand.u32 %s49, 1
        %s106 = scalar_lea.sflag [#allocation3], %s105
        %s107 = sand.u32 %s49, 1
        %s108 = smul.addr %s107, 64
        %s109 = scalar_lea.vmem [#allocation2], %s108
        %p110 = scmp.lt.s32.totalorder %s15, 1
        %s111 = scalar_select %p110, %s15, 1
        %s112 = smul.addr %s111, 72
        %s113 = smul.addr %s112, 8
        %s114 = scalar_lea.vmem %s0, %s113
        %v115 = vld [vmem:[%s114] sm:$0xff]
        %v116 = vld [vmem:[%s114 + $0x40] sm:$0xff]
        %v117 = vld [vmem:[%s114 + $0x80] sm:$0xff]
        %v118 = vld [vmem:[%s114 + $0xc0] sm:$0xff]
        %v119 = vld [vmem:[%s114 + $0x100] sm:$0xff]
        %v120 = vld [vmem:[%s114 + $0x140] sm:$0xff]
        %v121 = vld [vmem:[%s114 + $0x180] sm:$0xff]
        %v122 = vld [vmem:[%s114 + $0x1c0] sm:$0xff]
        %v123 = vmul.f32 %v115, 0.015625
        %v124 = vmul.f32 %v116, 0.015625
        %v125 = vmul.f32 %v117, 0.015625
        %v126 = vmul.f32 %v118, 0.015625
        %v127 = vmul.f32 %v119, 0.015625
        %v128 = vmul.f32 %v120, 0.015625
        %v129 = vmul.f32 %v121, 0.015625
        %v130 = vmul.f32 %v122, 0.015625
        %v131 = vadd.f32 %v123, 0.0
        %v132 = vadd.f32 %v124, 0.0
        %v133 = vadd.f32 %v125, 0.0
        %v134 = vadd.f32 %v126, 0.0
        %v135 = vadd.f32 %v127, 0.0
        %v136 = vadd.f32 %v128, 0.0
        %v137 = vadd.f32 %v129, 0.0
        %v138 = vadd.f32 %v130, 0.0
        %v139 = vld [vmem:[%s114 + $0x8] sm:$0xff]
        %v140 = vld [vmem:[%s114 + $0x48] sm:$0xff]
        %v141 = vld [vmem:[%s114 + $0x88] sm:$0xff]
        %v142 = vld [vmem:[%s114 + $0xc8] sm:$0xff]
        %v143 = vld [vmem:[%s114 + $0x108] sm:$0xff]
        %v144 = vld [vmem:[%s114 + $0x148] sm:$0xff]
        %v145 = vld [vmem:[%s114 + $0x188] sm:$0xff]
        %v146 = vld [vmem:[%s114 + $0x1c8] sm:$0xff]
        %v147 = vmul.f32 %v139, 0.046875
        %v148 = vmul.f32 %v140, 0.046875
        %v149 = vmul.f32 %v141, 0.046875
        %v150 = vmul.f32 %v142, 0.046875
        %v151 = vmul.f32 %v143, 0.046875
        %v152 = vmul.f32 %v144, 0.046875
        %v153 = vmul.f32 %v145, 0.046875
        %v154 = vmul.f32 %v146, 0.046875
        %v155 = vadd.f32 %v131, %v147
        %v156 = vadd.f32 %v132, %v148
        %v157 = vadd.f32 %v133, %v149
        %v158 = vadd.f32 %v134, %v150
        %v159 = vadd.f32 %v135, %v151
        %v160 = vadd.f32 %v136, %v152
        %v161 = vadd.f32 %v137, %v153
        %v162 = vadd.f32 %v138, %v154
        %v163 = vld [vmem:[%s114 + $0x10] sm:$0xff]
        %v164 = vld [vmem:[%s114 + $0x50] sm:$0xff]
        %v165 = vld [vmem:[%s114 + $0x90] sm:$0xff]
        %v166 = vld [vmem:[%s114 + $0xd0] sm:$0xff]
        %v167 = vld [vmem:[%s114 + $0x110] sm:$0xff]
        %v168 = vld [vmem:[%s114 + $0x150] sm:$0xff]
        %v169 = vld [vmem:[%s114 + $0x190] sm:$0xff]
        %v170 = vld [vmem:[%s114 + $0x1d0] sm:$0xff]
        %v171 = vmul.f32 %v163, 0.046875
        %v172 = vmul.f32 %v164, 0.046875
        %v173 = vmul.f32 %v165, 0.046875
        %v174 = vmul.f32 %v166, 0.046875
        %v175 = vmul.f32 %v167, 0.046875
        %v176 = vmul.f32 %v168, 0.046875
        %v177 = vmul.f32 %v169, 0.046875
        %v178 = vmul.f32 %v170, 0.046875
        %v179 = vadd.f32 %v155, %v171
        %v180 = vadd.f32 %v156, %v172
        %v181 = vadd.f32 %v157, %v173
        %v182 = vadd.f32 %v158, %v174
        %v183 = vadd.f32 %v159, %v175
        %v184 = vadd.f32 %v160, %v176
        %v185 = vadd.f32 %v161, %v177
        %v186 = vadd.f32 %v162, %v178
        %v187 = vld [vmem:[%s114 + $0x18] sm:$0xff]
        %v188 = vld [vmem:[%s114 + $0x58] sm:$0xff]
        %v189 = vld [vmem:[%s114 + $0x98] sm:$0xff]
        %v190 = vld [vmem:[%s114 + $0xd8] sm:$0xff]
        %v191 = vld [vmem:[%s114 + $0x118] sm:$0xff]
        %v192 = vld [vmem:[%s114 + $0x158] sm:$0xff]
        %v193 = vld [vmem:[%s114 + $0x198] sm:$0xff]
        %v194 = vld [vmem:[%s114 + $0x1d8] sm:$0xff]
        %v195 = vmul.f32 %v187, 0.140625
        %v196 = vmul.f32 %v188, 0.140625
        %v197 = vmul.f32 %v189, 0.140625
        %v198 = vmul.f32 %v190, 0.140625
        %v199 = vmul.f32 %v191, 0.140625
        %v200 = vmul.f32 %v192, 0.140625
        %v201 = vmul.f32 %v193, 0.140625
        %v202 = vmul.f32 %v194, 0.140625
        %v203 = vadd.f32 %v179, %v195
        %v204 = vadd.f32 %v180, %v196
        %v205 = vadd.f32 %v181, %v197
        %v206 = vadd.f32 %v182, %v198
        %v207 = vadd.f32 %v183, %v199
        %v208 = vadd.f32 %v184, %v200
        %v209 = vadd.f32 %v185, %v201
        %v210 = vadd.f32 %v186, %v202
        %v211 = vld [vmem:[%s114] sm:$0xfe]
        %v212 = vld [vmem:[%s114 + $0x20] sm:$0x1]
        %v213 = vld [vmem:[%s114 + $0x40] sm:$0xfe]
        %v214 = vld [vmem:[%s114 + $0x60] sm:$0x1]
        %v215 = vld [vmem:[%s114 + $0x80] sm:$0xfe]
        %v216 = vld [vmem:[%s114 + $0xa0] sm:$0x1]
        %v217 = vld [vmem:[%s114 + $0xc0] sm:$0xfe]
        %v218 = vld [vmem:[%s114 + $0xe0] sm:$0x1]
        %v219 = vld [vmem:[%s114 + $0x100] sm:$0xfe]
        %v220 = vld [vmem:[%s114 + $0x120] sm:$0x1]
        %v221 = vld [vmem:[%s114 + $0x140] sm:$0xfe]
        %v222 = vld [vmem:[%s114 + $0x160] sm:$0x1]
        %v223 = vld [vmem:[%s114 + $0x180] sm:$0xfe]
        %v224 = vld [vmem:[%s114 + $0x1a0] sm:$0x1]
        %v225 = vld [vmem:[%s114 + $0x1c0] sm:$0xfe]
        %v226 = vld [vmem:[%s114 + $0x1e0] sm:$0x1]
        %v227 = vmul.f32 %v211, 0.046875
        %v228 = vmul.f32 %v212, 0.046875
        %v229 = vmul.f32 %v213, 0.046875
        %v230 = vmul.f32 %v214, 0.046875
        %v231 = vmul.f32 %v215, 0.046875
        %v232 = vmul.f32 %v216, 0.046875
        %v233 = vmul.f32 %v217, 0.046875
        %v234 = vmul.f32 %v218, 0.046875
        %v235 = vmul.f32 %v219, 0.046875
        %v236 = vmul.f32 %v220, 0.046875
        %v237 = vmul.f32 %v221, 0.046875
        %v238 = vmul.f32 %v222, 0.046875
        %v239 = vmul.f32 %v223, 0.046875
        %v240 = vmul.f32 %v224, 0.046875
        %v241 = vmul.f32 %v225, 0.046875
        %v242 = vmul.f32 %v226, 0.046875
        %vm259 = vcmask 1046528
        %v260 = vrot.slane %v227, 1
        %v261 = vrot.slane %v228, 1
        %v262 = vsel %vm259, %v260, %v261
        %v263 = vrot.slane %v229, 1
        %v264 = vrot.slane %v230, 1
        %v265 = vsel %vm259, %v263, %v264
        %v266 = vrot.slane %v231, 1
        %v267 = vrot.slane %v232, 1
        %v268 = vsel %vm259, %v266, %v267
        %v269 = vrot.slane %v233, 1
        %v270 = vrot.slane %v234, 1
        %v271 = vsel %vm259, %v269, %v270
        %v272 = vrot.slane %v235, 1
        %v273 = vrot.slane %v236, 1
        %v274 = vsel %vm259, %v272, %v273
        %v275 = vrot.slane %v237, 1
        %v276 = vrot.slane %v238, 1
        %v277 = vsel %vm259, %v275, %v276
        %v278 = vrot.slane %v239, 1
        %v279 = vrot.slane %v240, 1
        %v280 = vsel %vm259, %v278, %v279
        %v281 = vrot.slane %v241, 1
        %v282 = vrot.slane %v242, 1
        %v283 = vsel %vm259, %v281, %v282
        %v292 = vadd.f32 %v203, %v262
        %v293 = vadd.f32 %v204, %v265
        %v294 = vadd.f32 %v205, %v268
        %v295 = vadd.f32 %v206, %v271
        %v296 = vadd.f32 %v207, %v274
        %v297 = vadd.f32 %v208, %v277
        %v298 = vadd.f32 %v209, %v280
        %v299 = vadd.f32 %v210, %v283
        %v300 = vld [vmem:[%s114 + $0x8] sm:$0xfe]
        %v301 = vld [vmem:[%s114 + $0x28] sm:$0x1]
        %v302 = vld [vmem:[%s114 + $0x48] sm:$0xfe]
        %v303 = vld [vmem:[%s114 + $0x68] sm:$0x1]
        %v304 = vld [vmem:[%s114 + $0x88] sm:$0xfe]
        %v305 = vld [vmem:[%s114 + $0xa8] sm:$0x1]
        %v306 = vld [vmem:[%s114 + $0xc8] sm:$0xfe]
        %v307 = vld [vmem:[%s114 + $0xe8] sm:$0x1]
        %v308 = vld [vmem:[%s114 + $0x108] sm:$0xfe]
        %v309 = vld [vmem:[%s114 + $0x128] sm:$0x1]
        %v310 = vld [vmem:[%s114 + $0x148] sm:$0xfe]
        %v311 = vld [vmem:[%s114 + $0x168] sm:$0x1]
        %v312 = vld [vmem:[%s114 + $0x188] sm:$0xfe]
        %v313 = vld [vmem:[%s114 + $0x1a8] sm:$0x1]
        %v314 = vld [vmem:[%s114 + $0x1c8] sm:$0xfe]
        %v315 = vld [vmem:[%s114 + $0x1e8] sm:$0x1]
        %v316 = vmul.f32 %v300, 0.015625
        %v317 = vmul.f32 %v301, 0.015625
        %v318 = vmul.f32 %v302, 0.015625
        %v319 = vmul.f32 %v303, 0.015625
        %v320 = vmul.f32 %v304, 0.015625
        %v321 = vmul.f32 %v305, 0.015625
        %v322 = vmul.f32 %v306, 0.015625
        %v323 = vmul.f32 %v307, 0.015625
        %v324 = vmul.f32 %v308, 0.015625
        %v325 = vmul.f32 %v309, 0.015625
        %v326 = vmul.f32 %v310, 0.015625
        %v327 = vmul.f32 %v311, 0.015625
        %v328 = vmul.f32 %v312, 0.015625
        %v329 = vmul.f32 %v313, 0.015625
        %v330 = vmul.f32 %v314, 0.015625
        %v331 = vmul.f32 %v315, 0.015625
        %v348 = vrot.slane %v316, 1
        %v349 = vrot.slane %v317, 1
        %v350 = vsel %vm259, %v348, %v349
        %v351 = vrot.slane %v318, 1
        %v352 = vrot.slane %v319, 1
        %v353 = vsel %vm259, %v351, %v352
        %v354 = vrot.slane %v320, 1
        %v355 = vrot.slane %v321, 1
        %v356 = vsel %vm259, %v354, %v355
        %v357 = vrot.slane %v322, 1
        %v358 = vrot.slane %v323, 1
        %v359 = vsel %vm259, %v357, %v358
        %v360 = vrot.slane %v324, 1
        %v361 = vrot.slane %v325, 1
        %v362 = vsel %vm259, %v360, %v361
        %v363 = vrot.slane %v326, 1
        %v364 = vrot.slane %v327, 1
        %v365 = vsel %vm259, %v363, %v364
        %v366 = vrot.slane %v328, 1
        %v367 = vrot.slane %v329, 1
        %v368 = vsel %vm259, %v366, %v367
        %v369 = vrot.slane %v330, 1
        %v370 = vrot.slane %v331, 1
        %v371 = vsel %vm259, %v369, %v370
        %v380 = vadd.f32 %v292, %v350
        %v381 = vadd.f32 %v293, %v353
        %v382 = vadd.f32 %v294, %v356
        %v383 = vadd.f32 %v295, %v359
        %v384 = vadd.f32 %v296, %v362
        %v385 = vadd.f32 %v297, %v365
        %v386 = vadd.f32 %v298, %v368
        %v387 = vadd.f32 %v299, %v371
        %v388 = vld [vmem:[%s114 + $0x10] sm:$0xfe]
        %v389 = vld [vmem:[%s114 + $0x30] sm:$0x1]
        %v390 = vld [vmem:[%s114 + $0x50] sm:$0xfe]
        %v391 = vld [vmem:[%s114 + $0x70] sm:$0x1]
        %v392 = vld [vmem:[%s114 + $0x90] sm:$0xfe]
        %v393 = vld [vmem:[%s114 + $0xb0] sm:$0x1]
        %v394 = vld [vmem:[%s114 + $0xd0] sm:$0xfe]
        %v395 = vld [vmem:[%s114 + $0xf0] sm:$0x1]
        %v396 = vld [vmem:[%s114 + $0x110] sm:$0xfe]
        %v397 = vld [vmem:[%s114 + $0x130] sm:$0x1]
        %v398 = vld [vmem:[%s114 + $0x150] sm:$0xfe]
        %v399 = vld [vmem:[%s114 + $0x170] sm:$0x1]
        %v400 = vld [vmem:[%s114 + $0x190] sm:$0xfe]
        %v401 = vld [vmem:[%s114 + $0x1b0] sm:$0x1]
        %v402 = vld [vmem:[%s114 + $0x1d0] sm:$0xfe]
        %v403 = vld [vmem:[%s114 + $0x1f0] sm:$0x1]
        %v404 = vmul.f32 %v388, 0.140625
        %v405 = vmul.f32 %v389, 0.140625
        %v406 = vmul.f32 %v390, 0.140625
        %v407 = vmul.f32 %v391, 0.140625
        %v408 = vmul.f32 %v392, 0.140625
        %v409 = vmul.f32 %v393, 0.140625
        %v410 = vmul.f32 %v394, 0.140625
        %v411 = vmul.f32 %v395, 0.140625
        %v412 = vmul.f32 %v396, 0.140625
        %v413 = vmul.f32 %v397, 0.140625
        %v414 = vmul.f32 %v398, 0.140625
        %v415 = vmul.f32 %v399, 0.140625
        %v416 = vmul.f32 %v400, 0.140625
        %v417 = vmul.f32 %v401, 0.140625
        %v418 = vmul.f32 %v402, 0.140625
        %v419 = vmul.f32 %v403, 0.140625
        %v436 = vrot.slane %v404, 1
        %v437 = vrot.slane %v405, 1
        %v438 = vsel %vm259, %v436, %v437
        %v439 = vrot.slane %v406, 1
        %v440 = vrot.slane %v407, 1
        %v441 = vsel %vm259, %v439, %v440
        %v442 = vrot.slane %v408, 1
        %v443 = vrot.slane %v409, 1
        %v444 = vsel %vm259, %v442, %v443
        %v445 = vrot.slane %v410, 1
        %v446 = vrot.slane %v411, 1
        %v447 = vsel %vm259, %v445, %v446
        %v448 = vrot.slane %v412, 1
        %v449 = vrot.slane %v413, 1
        %v450 = vsel %vm259, %v448, %v449
        %v451 = vrot.slane %v414, 1
        %v452 = vrot.slane %v415, 1
        %v453 = vsel %vm259, %v451, %v452
        %v454 = vrot.slane %v416, 1
        %v455 = vrot.slane %v417, 1
        %v456 = vsel %vm259, %v454, %v455
        %v457 = vrot.slane %v418, 1
        %v458 = vrot.slane %v419, 1
        %v459 = vsel %vm259, %v457, %v458
        %v468 = vadd.f32 %v380, %v438
        %v469 = vadd.f32 %v381, %v441
        %v470 = vadd.f32 %v382, %v444
        %v471 = vadd.f32 %v383, %v447
        %v472 = vadd.f32 %v384, %v450
        %v473 = vadd.f32 %v385, %v453
        %v474 = vadd.f32 %v386, %v456
        %v475 = vadd.f32 %v387, %v459
        %v476 = vld [vmem:[%s114 + $0x18] sm:$0xfe]
        %v477 = vld [vmem:[%s114 + $0x38] sm:$0x1]
        %v478 = vld [vmem:[%s114 + $0x58] sm:$0xfe]
        %v479 = vld [vmem:[%s114 + $0x78] sm:$0x1]
        %v480 = vld [vmem:[%s114 + $0x98] sm:$0xfe]
        %v481 = vld [vmem:[%s114 + $0xb8] sm:$0x1]
        %v482 = vld [vmem:[%s114 + $0xd8] sm:$0xfe]
        %v483 = vld [vmem:[%s114 + $0xf8] sm:$0x1]
        %v484 = vld [vmem:[%s114 + $0x118] sm:$0xfe]
        %v485 = vld [vmem:[%s114 + $0x138] sm:$0x1]
        %v486 = vld [vmem:[%s114 + $0x158] sm:$0xfe]
        %v487 = vld [vmem:[%s114 + $0x178] sm:$0x1]
        %v488 = vld [vmem:[%s114 + $0x198] sm:$0xfe]
        %v489 = vld [vmem:[%s114 + $0x1b8] sm:$0x1]
        %v490 = vld [vmem:[%s114 + $0x1d8] sm:$0xfe]
        %v491 = vld [vmem:[%s114 + $0x1f8] sm:$0x1]
        %v492 = vmul.f32 %v476, 0.046875
        %v493 = vmul.f32 %v477, 0.046875
        %v494 = vmul.f32 %v478, 0.046875
        %v495 = vmul.f32 %v479, 0.046875
        %v496 = vmul.f32 %v480, 0.046875
        %v497 = vmul.f32 %v481, 0.046875
        %v498 = vmul.f32 %v482, 0.046875
        %v499 = vmul.f32 %v483, 0.046875
        %v500 = vmul.f32 %v484, 0.046875
        %v501 = vmul.f32 %v485, 0.046875
        %v502 = vmul.f32 %v486, 0.046875
        %v503 = vmul.f32 %v487, 0.046875
        %v504 = vmul.f32 %v488, 0.046875
        %v505 = vmul.f32 %v489, 0.046875
        %v506 = vmul.f32 %v490, 0.046875
        %v507 = vmul.f32 %v491, 0.046875
        %v524 = vrot.slane %v492, 1
        %v525 = vrot.slane %v493, 1
        %v526 = vsel %vm259, %v524, %v525
        %v527 = vrot.slane %v494, 1
        %v528 = vrot.slane %v495, 1
        %v529 = vsel %vm259, %v527, %v528
        %v530 = vrot.slane %v496, 1
        %v531 = vrot.slane %v497, 1
        %v532 = vsel %vm259, %v530, %v531
        %v533 = vrot.slane %v498, 1
        %v534 = vrot.slane %v499, 1
        %v535 = vsel %vm259, %v533, %v534
        %v536 = vrot.slane %v500, 1
        %v537 = vrot.slane %v501, 1
        %v538 = vsel %vm259, %v536, %v537
        %v539 = vrot.slane %v502, 1
        %v540 = vrot.slane %v503, 1
        %v541 = vsel %vm259, %v539, %v540
        %v542 = vrot.slane %v504, 1
        %v543 = vrot.slane %v505, 1
        %v544 = vsel %vm259, %v542, %v543
        %v545 = vrot.slane %v506, 1
        %v546 = vrot.slane %v507, 1
        %v547 = vsel %vm259, %v545, %v546
        %v556 = vadd.f32 %v468, %v526
        %v557 = vadd.f32 %v469, %v529
        %v558 = vadd.f32 %v470, %v532
        %v559 = vadd.f32 %v471, %v535
        %v560 = vadd.f32 %v472, %v538
        %v561 = vadd.f32 %v473, %v541
        %v562 = vadd.f32 %v474, %v544
        %v563 = vadd.f32 %v475, %v547
        %s564 = scalar_lea.vmem %s114, 64
        %v565 = vld [vmem:[%s564] sm:$0xff]
        %v566 = vld [vmem:[%s564 + $0x40] sm:$0xff]
        %v567 = vld [vmem:[%s564 + $0x80] sm:$0xff]
        %v568 = vld [vmem:[%s564 + $0xc0] sm:$0xff]
        %v569 = vld [vmem:[%s564 + $0x100] sm:$0xff]
        %v570 = vld [vmem:[%s564 + $0x140] sm:$0xff]
        %v571 = vld [vmem:[%s564 + $0x180] sm:$0xff]
        %v572 = vld [vmem:[%s564 + $0x1c0] sm:$0xff]
        %v573 = vmul.f32 %v565, 0.046875
        %v574 = vmul.f32 %v566, 0.046875
        %v575 = vmul.f32 %v567, 0.046875
        %v576 = vmul.f32 %v568, 0.046875
        %v577 = vmul.f32 %v569, 0.046875
        %v578 = vmul.f32 %v570, 0.046875
        %v579 = vmul.f32 %v571, 0.046875
        %v580 = vmul.f32 %v572, 0.046875
        %v581 = vadd.f32 %v556, %v573
        %v582 = vadd.f32 %v557, %v574
        %v583 = vadd.f32 %v558, %v575
        %v584 = vadd.f32 %v559, %v576
        %v585 = vadd.f32 %v560, %v577
        %v586 = vadd.f32 %v561, %v578
        %v587 = vadd.f32 %v562, %v579
        %v588 = vadd.f32 %v563, %v580
        %v589 = vld [vmem:[%s564 + $0x8] sm:$0xff]
        %v590 = vld [vmem:[%s564 + $0x48] sm:$0xff]
        %v591 = vld [vmem:[%s564 + $0x88] sm:$0xff]
        %v592 = vld [vmem:[%s564 + $0xc8] sm:$0xff]
        %v593 = vld [vmem:[%s564 + $0x108] sm:$0xff]
        %v594 = vld [vmem:[%s564 + $0x148] sm:$0xff]
        %v595 = vld [vmem:[%s564 + $0x188] sm:$0xff]
        %v596 = vld [vmem:[%s564 + $0x1c8] sm:$0xff]
        %v597 = vmul.f32 %v589, 0.140625
        %v598 = vmul.f32 %v590, 0.140625
        %v599 = vmul.f32 %v591, 0.140625
        %v600 = vmul.f32 %v592, 0.140625
        %v601 = vmul.f32 %v593, 0.140625
        %v602 = vmul.f32 %v594, 0.140625
        %v603 = vmul.f32 %v595, 0.140625
        %v604 = vmul.f32 %v596, 0.140625
        %v605 = vadd.f32 %v581, %v597
        %v606 = vadd.f32 %v582, %v598
        %v607 = vadd.f32 %v583, %v599
        %v608 = vadd.f32 %v584, %v600
        %v609 = vadd.f32 %v585, %v601
        %v610 = vadd.f32 %v586, %v602
        %v611 = vadd.f32 %v587, %v603
        %v612 = vadd.f32 %v588, %v604
        %v613 = vld [vmem:[%s564 + $0x10] sm:$0xff]
        %v614 = vld [vmem:[%s564 + $0x50] sm:$0xff]
        %v615 = vld [vmem:[%s564 + $0x90] sm:$0xff]
        %v616 = vld [vmem:[%s564 + $0xd0] sm:$0xff]
        %v617 = vld [vmem:[%s564 + $0x110] sm:$0xff]
        %v618 = vld [vmem:[%s564 + $0x150] sm:$0xff]
        %v619 = vld [vmem:[%s564 + $0x190] sm:$0xff]
        %v620 = vld [vmem:[%s564 + $0x1d0] sm:$0xff]
        %v621 = vmul.f32 %v613, 0.015625
        %v622 = vmul.f32 %v614, 0.015625
        %v623 = vmul.f32 %v615, 0.015625
        %v624 = vmul.f32 %v616, 0.015625
        %v625 = vmul.f32 %v617, 0.015625
        %v626 = vmul.f32 %v618, 0.015625
        %v627 = vmul.f32 %v619, 0.015625
        %v628 = vmul.f32 %v620, 0.015625
        %v629 = vadd.f32 %v605, %v621
        %v630 = vadd.f32 %v606, %v622
        %v631 = vadd.f32 %v607, %v623
        %v632 = vadd.f32 %v608, %v624
        %v633 = vadd.f32 %v609, %v625
        %v634 = vadd.f32 %v610, %v626
        %v635 = vadd.f32 %v611, %v627
        %v636 = vadd.f32 %v612, %v628
        %v637 = vld [vmem:[%s564 + $0x18] sm:$0xff]
        %v638 = vld [vmem:[%s564 + $0x58] sm:$0xff]
        %v639 = vld [vmem:[%s564 + $0x98] sm:$0xff]
        %v640 = vld [vmem:[%s564 + $0xd8] sm:$0xff]
        %v641 = vld [vmem:[%s564 + $0x118] sm:$0xff]
        %v642 = vld [vmem:[%s564 + $0x158] sm:$0xff]
        %v643 = vld [vmem:[%s564 + $0x198] sm:$0xff]
        %v644 = vld [vmem:[%s564 + $0x1d8] sm:$0xff]
        %v645 = vmul.f32 %v637, 0.046875
        %v646 = vmul.f32 %v638, 0.046875
        %v647 = vmul.f32 %v639, 0.046875
        %v648 = vmul.f32 %v640, 0.046875
        %v649 = vmul.f32 %v641, 0.046875
        %v650 = vmul.f32 %v642, 0.046875
        %v651 = vmul.f32 %v643, 0.046875
        %v652 = vmul.f32 %v644, 0.046875
        %v653 = vadd.f32 %v629, %v645
        %v654 = vadd.f32 %v630, %v646
        %v655 = vadd.f32 %v631, %v647
        %v656 = vadd.f32 %v632, %v648
        %v657 = vadd.f32 %v633, %v649
        %v658 = vadd.f32 %v634, %v650
        %v659 = vadd.f32 %v635, %v651
        %v660 = vadd.f32 %v636, %v652
        %v661 = vld [vmem:[%s564] sm:$0xfe]
        %v662 = vld [vmem:[%s564 + $0x20] sm:$0x1]
        %v663 = vld [vmem:[%s564 + $0x40] sm:$0xfe]
        %v664 = vld [vmem:[%s564 + $0x60] sm:$0x1]
        %v665 = vld [vmem:[%s564 + $0x80] sm:$0xfe]
        %v666 = vld [vmem:[%s564 + $0xa0] sm:$0x1]
        %v667 = vld [vmem:[%s564 + $0xc0] sm:$0xfe]
        %v668 = vld [vmem:[%s564 + $0xe0] sm:$0x1]
        %v669 = vld [vmem:[%s564 + $0x100] sm:$0xfe]
        %v670 = vld [vmem:[%s564 + $0x120] sm:$0x1]
        %v671 = vld [vmem:[%s564 + $0x140] sm:$0xfe]
        %v672 = vld [vmem:[%s564 + $0x160] sm:$0x1]
        %v673 = vld [vmem:[%s564 + $0x180] sm:$0xfe]
        %v674 = vld [vmem:[%s564 + $0x1a0] sm:$0x1]
        %v675 = vld [vmem:[%s564 + $0x1c0] sm:$0xfe]
        %v676 = vld [vmem:[%s564 + $0x1e0] sm:$0x1]
        %v677 = vmul.f32 %v661, 0.140625
        %v678 = vmul.f32 %v662, 0.140625
        %v679 = vmul.f32 %v663, 0.140625
        %v680 = vmul.f32 %v664, 0.140625
        %v681 = vmul.f32 %v665, 0.140625
        %v682 = vmul.f32 %v666, 0.140625
        %v683 = vmul.f32 %v667, 0.140625
        %v684 = vmul.f32 %v668, 0.140625
        %v685 = vmul.f32 %v669, 0.140625
        %v686 = vmul.f32 %v670, 0.140625
        %v687 = vmul.f32 %v671, 0.140625
        %v688 = vmul.f32 %v672, 0.140625
        %v689 = vmul.f32 %v673, 0.140625
        %v690 = vmul.f32 %v674, 0.140625
        %v691 = vmul.f32 %v675, 0.140625
        %v692 = vmul.f32 %v676, 0.140625
        %v709 = vrot.slane %v677, 1
        %v710 = vrot.slane %v678, 1
        %v711 = vsel %vm259, %v709, %v710
        %v712 = vrot.slane %v679, 1
        %v713 = vrot.slane %v680, 1
        %v714 = vsel %vm259, %v712, %v713
        %v715 = vrot.slane %v681, 1
        %v716 = vrot.slane %v682, 1
        %v717 = vsel %vm259, %v715, %v716
        %v718 = vrot.slane %v683, 1
        %v719 = vrot.slane %v684, 1
        %v720 = vsel %vm259, %v718, %v719
        %v721 = vrot.slane %v685, 1
        %v722 = vrot.slane %v686, 1
        %v723 = vsel %vm259, %v721, %v722
        %v724 = vrot.slane %v687, 1
        %v725 = vrot.slane %v688, 1
        %v726 = vsel %vm259, %v724, %v725
        %v727 = vrot.slane %v689, 1
        %v728 = vrot.slane %v690, 1
        %v729 = vsel %vm259, %v727, %v728
        %v730 = vrot.slane %v691, 1
        %v731 = vrot.slane %v692, 1
        %v732 = vsel %vm259, %v730, %v731
        %v741 = vadd.f32 %v653, %v711
        %v742 = vadd.f32 %v654, %v714
        %v743 = vadd.f32 %v655, %v717
        %v744 = vadd.f32 %v656, %v720
        %v745 = vadd.f32 %v657, %v723
        %v746 = vadd.f32 %v658, %v726
        %v747 = vadd.f32 %v659, %v729
        %v748 = vadd.f32 %v660, %v732
        %v749 = vld [vmem:[%s564 + $0x8] sm:$0xfe]
        %v750 = vld [vmem:[%s564 + $0x28] sm:$0x1]
        %v751 = vld [vmem:[%s564 + $0x48] sm:$0xfe]
        %v752 = vld [vmem:[%s564 + $0x68] sm:$0x1]
        %v753 = vld [vmem:[%s564 + $0x88] sm:$0xfe]
        %v754 = vld [vmem:[%s564 + $0xa8] sm:$0x1]
        %v755 = vld [vmem:[%s564 + $0xc8] sm:$0xfe]
        %v756 = vld [vmem:[%s564 + $0xe8] sm:$0x1]
        %v757 = vld [vmem:[%s564 + $0x108] sm:$0xfe]
        %v758 = vld [vmem:[%s564 + $0x128] sm:$0x1]
        %v759 = vld [vmem:[%s564 + $0x148] sm:$0xfe]
        %v760 = vld [vmem:[%s564 + $0x168] sm:$0x1]
        %v761 = vld [vmem:[%s564 + $0x188] sm:$0xfe]
        %v762 = vld [vmem:[%s564 + $0x1a8] sm:$0x1]
        %v763 = vld [vmem:[%s564 + $0x1c8] sm:$0xfe]
        %v764 = vld [vmem:[%s564 + $0x1e8] sm:$0x1]
        %v765 = vmul.f32 %v749, 0.046875
        %v766 = vmul.f32 %v750, 0.046875
        %v767 = vmul.f32 %v751, 0.046875
        %v768 = vmul.f32 %v752, 0.046875
        %v769 = vmul.f32 %v753, 0.046875
        %v770 = vmul.f32 %v754, 0.046875
        %v771 = vmul.f32 %v755, 0.046875
        %v772 = vmul.f32 %v756, 0.046875
        %v773 = vmul.f32 %v757, 0.046875
        %v774 = vmul.f32 %v758, 0.046875
        %v775 = vmul.f32 %v759, 0.046875
        %v776 = vmul.f32 %v760, 0.046875
        %v777 = vmul.f32 %v761, 0.046875
        %v778 = vmul.f32 %v762, 0.046875
        %v779 = vmul.f32 %v763, 0.046875
        %v780 = vmul.f32 %v764, 0.046875
        %v797 = vrot.slane %v765, 1
        %v798 = vrot.slane %v766, 1
        %v799 = vsel %vm259, %v797, %v798
        %v800 = vrot.slane %v767, 1
        %v801 = vrot.slane %v768, 1
        %v802 = vsel %vm259, %v800, %v801
        %v803 = vrot.slane %v769, 1
        %v804 = vrot.slane %v770, 1
        %v805 = vsel %vm259, %v803, %v804
        %v806 = vrot.slane %v771, 1
        %v807 = vrot.slane %v772, 1
        %v808 = vsel %vm259, %v806, %v807
        %v809 = vrot.slane %v773, 1
        %v810 = vrot.slane %v774, 1
        %v811 = vsel %vm259, %v809, %v810
        %v812 = vrot.slane %v775, 1
        %v813 = vrot.slane %v776, 1
        %v814 = vsel %vm259, %v812, %v813
        %v815 = vrot.slane %v777, 1
        %v816 = vrot.slane %v778, 1
        %v817 = vsel %vm259, %v815, %v816
        %v818 = vrot.slane %v779, 1
        %v819 = vrot.slane %v780, 1
        %v820 = vsel %vm259, %v818, %v819
        %v829 = vadd.f32 %v741, %v799
        %v830 = vadd.f32 %v742, %v802
        %v831 = vadd.f32 %v743, %v805
        %v832 = vadd.f32 %v744, %v808
        %v833 = vadd.f32 %v745, %v811
        %v834 = vadd.f32 %v746, %v814
        %v835 = vadd.f32 %v747, %v817
        %v836 = vadd.f32 %v748, %v820
        %v837 = vld [vmem:[%s564 + $0x10] sm:$0xfe]
        %v838 = vld [vmem:[%s564 + $0x30] sm:$0x1]
        %v839 = vld [vmem:[%s564 + $0x50] sm:$0xfe]
        %v840 = vld [vmem:[%s564 + $0x70] sm:$0x1]
        %v841 = vld [vmem:[%s564 + $0x90] sm:$0xfe]
        %v842 = vld [vmem:[%s564 + $0xb0] sm:$0x1]
        %v843 = vld [vmem:[%s564 + $0xd0] sm:$0xfe]
        %v844 = vld [vmem:[%s564 + $0xf0] sm:$0x1]
        %v845 = vld [vmem:[%s564 + $0x110] sm:$0xfe]
        %v846 = vld [vmem:[%s564 + $0x130] sm:$0x1]
        %v847 = vld [vmem:[%s564 + $0x150] sm:$0xfe]
        %v848 = vld [vmem:[%s564 + $0x170] sm:$0x1]
        %v849 = vld [vmem:[%s564 + $0x190] sm:$0xfe]
        %v850 = vld [vmem:[%s564 + $0x1b0] sm:$0x1]
        %v851 = vld [vmem:[%s564 + $0x1d0] sm:$0xfe]
        %v852 = vld [vmem:[%s564 + $0x1f0] sm:$0x1]
        %v853 = vmul.f32 %v837, 0.046875
        %v854 = vmul.f32 %v838, 0.046875
        %v855 = vmul.f32 %v839, 0.046875
        %v856 = vmul.f32 %v840, 0.046875
        %v857 = vmul.f32 %v841, 0.046875
        %v858 = vmul.f32 %v842, 0.046875
        %v859 = vmul.f32 %v843, 0.046875
        %v860 = vmul.f32 %v844, 0.046875
        %v861 = vmul.f32 %v845, 0.046875
        %v862 = vmul.f32 %v846, 0.046875
        %v863 = vmul.f32 %v847, 0.046875
        %v864 = vmul.f32 %v848, 0.046875
        %v865 = vmul.f32 %v849, 0.046875
        %v866 = vmul.f32 %v850, 0.046875
        %v867 = vmul.f32 %v851, 0.046875
        %v868 = vmul.f32 %v852, 0.046875
        %v885 = vrot.slane %v853, 1
        %v886 = vrot.slane %v854, 1
        %v887 = vsel %vm259, %v885, %v886
        %v888 = vrot.slane %v855, 1
        %v889 = vrot.slane %v856, 1
        %v890 = vsel %vm259, %v888, %v889
        %v891 = vrot.slane %v857, 1
        %v892 = vrot.slane %v858, 1
        %v893 = vsel %vm259, %v891, %v892
        %v894 = vrot.slane %v859, 1
        %v895 = vrot.slane %v860, 1
        %v896 = vsel %vm259, %v894, %v895
        %v897 = vrot.slane %v861, 1
        %v898 = vrot.slane %v862, 1
        %v899 = vsel %vm259, %v897, %v898
        %v900 = vrot.slane %v863, 1
        %v901 = vrot.slane %v864, 1
        %v902 = vsel %vm259, %v900, %v901
        %v903 = vrot.slane %v865, 1
        %v904 = vrot.slane %v866, 1
        %v905 = vsel %vm259, %v903, %v904
        %v906 = vrot.slane %v867, 1
        %v907 = vrot.slane %v868, 1
        %v908 = vsel %vm259, %v906, %v907
        %v917 = vadd.f32 %v829, %v887
        %v918 = vadd.f32 %v830, %v890
        %v919 = vadd.f32 %v831, %v893
        %v920 = vadd.f32 %v832, %v896
        %v921 = vadd.f32 %v833, %v899
        %v922 = vadd.f32 %v834, %v902
        %v923 = vadd.f32 %v835, %v905
        %v924 = vadd.f32 %v836, %v908
        %v925 = vld [vmem:[%s564 + $0x18] sm:$0xfe]
        %v926 = vld [vmem:[%s564 + $0x38] sm:$0x1]
        %v927 = vld [vmem:[%s564 + $0x58] sm:$0xfe]
        %v928 = vld [vmem:[%s564 + $0x78] sm:$0x1]
        %v929 = vld [vmem:[%s564 + $0x98] sm:$0xfe]
        %v930 = vld [vmem:[%s564 + $0xb8] sm:$0x1]
        %v931 = vld [vmem:[%s564 + $0xd8] sm:$0xfe]
        %v932 = vld [vmem:[%s564 + $0xf8] sm:$0x1]
        %v933 = vld [vmem:[%s564 + $0x118] sm:$0xfe]
        %v934 = vld [vmem:[%s564 + $0x138] sm:$0x1]
        %v935 = vld [vmem:[%s564 + $0x158] sm:$0xfe]
        %v936 = vld [vmem:[%s564 + $0x178] sm:$0x1]
        %v937 = vld [vmem:[%s564 + $0x198] sm:$0xfe]
        %v938 = vld [vmem:[%s564 + $0x1b8] sm:$0x1]
        %v939 = vld [vmem:[%s564 + $0x1d8] sm:$0xfe]
        %v940 = vld [vmem:[%s564 + $0x1f8] sm:$0x1]
        %v941 = vmul.f32 %v925, 0.015625
        %v942 = vmul.f32 %v926, 0.015625
        %v943 = vmul.f32 %v927, 0.015625
        %v944 = vmul.f32 %v928, 0.015625
        %v945 = vmul.f32 %v929, 0.015625
        %v946 = vmul.f32 %v930, 0.015625
        %v947 = vmul.f32 %v931, 0.015625
        %v948 = vmul.f32 %v932, 0.015625
        %v949 = vmul.f32 %v933, 0.015625
        %v950 = vmul.f32 %v934, 0.015625
        %v951 = vmul.f32 %v935, 0.015625
        %v952 = vmul.f32 %v936, 0.015625
        %v953 = vmul.f32 %v937, 0.015625
        %v954 = vmul.f32 %v938, 0.015625
        %v955 = vmul.f32 %v939, 0.015625
        %v956 = vmul.f32 %v940, 0.015625
        %v973 = vrot.slane %v941, 1
        %v974 = vrot.slane %v942, 1
        %v975 = vsel %vm259, %v973, %v974
        %v976 = vrot.slane %v943, 1
        %v977 = vrot.slane %v944, 1
        %v978 = vsel %vm259, %v976, %v977
        %v979 = vrot.slane %v945, 1
        %v980 = vrot.slane %v946, 1
        %v981 = vsel %vm259, %v979, %v980
        %v982 = vrot.slane %v947, 1
        %v983 = vrot.slane %v948, 1
        %v984 = vsel %vm259, %v982, %v983
        %v985 = vrot.slane %v949, 1
        %v986 = vrot.slane %v950, 1
        %v987 = vsel %vm259, %v985, %v986
        %v988 = vrot.slane %v951, 1
        %v989 = vrot.slane %v952, 1
        %v990 = vsel %vm259, %v988, %v989
        %v991 = vrot.slane %v953, 1
        %v992 = vrot.slane %v954, 1
        %v993 = vsel %vm259, %v991, %v992
        %v994 = vrot.slane %v955, 1
        %v995 = vrot.slane %v956, 1
        %v996 = vsel %vm259, %v994, %v995
        %v1005 = vadd.f32 %v917, %v975
        %v1006 = vadd.f32 %v918, %v978
        %v1007 = vadd.f32 %v919, %v981
        %v1008 = vadd.f32 %v920, %v984
        %v1009 = vadd.f32 %v921, %v987
        %v1010 = vadd.f32 %v922, %v990
        %v1011 = vadd.f32 %v923, %v993
        %v1012 = vadd.f32 %v924, %v996
        %1013 = vst [vmem:[%s109] sm:$0xff] %v1005
        %1014 = vst [vmem:[%s109 + $0x8] sm:$0xff] %v1006
        %1015 = vst [vmem:[%s109 + $0x10] sm:$0xff] %v1007
        %1016 = vst [vmem:[%s109 + $0x18] sm:$0xff] %v1008
        %1017 = vst [vmem:[%s109 + $0x20] sm:$0xff] %v1009
        %1018 = vst [vmem:[%s109 + $0x28] sm:$0xff] %v1010
        %1019 = vst [vmem:[%s109 + $0x30] sm:$0xff] %v1011
        %1020 = vst [vmem:[%s109 + $0x38] sm:$0xff] %v1012
        %s1021 = sand.u32 %s49, 1
        %s1022 = scalar_lea.sflag [#allocation3], %s1021
        %s1023 = sand.u32 %s49, 1
        %s1024 = smul.addr %s1023, 64
        %s1025 = scalar_lea.vmem [#allocation2], %s1024
        // Predicated region
        $region25: #{tpu_custom_call.1} parent=23 // pred_check
          %p1026 = pneg %p59
        $region26: #{tpu_custom_call.1} parent=23 // pred_check_branch
          %1028 = sbr.rel (%p1026) target = $region28
        $region27: #{tpu_custom_call.1} parent=23 // pred_region
          %1030 = vsyncadd %s1022, 0
          %s1031 = smul.addr %s15, 8
          %s1032 = smul.addr %s1031, 8
          %s1033 = scalar_lea.hbm %s1, %s1032
          %s1034 = sshll.u32 %s1025, 4
          %s1035 = int_to_ptr.vmem [resolvable:$true] %s1034
          %s1036 = sshll.u32 %s1033, 4
          %s1037 = int_to_ptr.hbm [resolvable:$true] %s1036
          %1042 = dma.vmem_to_hbm [thread:$0]  %s1035, 1024, %s1037, %s1022, 128, 128, 8
        $region28: #{tpu_custom_call.1} parent=23 // pred_fallthru
          _
      $region24: #{tpu_custom_call.1} parent=5 // pred_fallthru
        _
      %p1043 = scmp.le.s32.totalorder 2, %s10
      // Predicated region
      $region29: #{tpu_custom_call.1} parent=5 // pred_check
        %p1044 = pneg %p1043
      $region30: #{tpu_custom_call.1} parent=5 // pred_check_branch
        %1046 = sbr.rel (%p1044) target = $region32
      $region31: #{tpu_custom_call.1} parent=5 // pred_region
        %s1047 = ssub.s32 %s10, 2
        // Predicated region
        $region33: #{tpu_custom_call.1} parent=31 // pred_check
          %p1048 = pneg %p65
        $region34: #{tpu_custom_call.1} parent=31 // pred_check_branch
          %1050 = sbr.rel (%p1048) target = $region36
        $region35: #{tpu_custom_call.1} parent=31 // pred_region
          %s1051 = sand.u32 %s50, 1
          %s1052 = scalar_lea.sflag [#allocation3], %s1051
          %s1053 = sand.u32 %s50, 1
          %s1054 = smul.addr %s1053, 64
          %s1055 = scalar_lea.vmem [#allocation2], %s1054
          %1057 = dma.done %s1052, 1024
        $region36: #{tpu_custom_call.1} parent=31 // pred_fallthru
          _
      $region32: #{tpu_custom_call.1} parent=5 // pred_fallthru
        _
    $region6: #{tpu_custom_call.1} parent=1 // loop_footer
      %s14 = sadd.s32 1, %s10
    $region7: #{tpu_custom_call.1} parent=1 // loop_footer_branch
      %9 = sbr.rel target = $region3
    $region8: #{tpu_custom_call.1} parent=1 // loop_exit
      _
    %1058 = vsyncpa [#allocation3], 1
    %s1059 = scalar_lea.sflag [#allocation3], 1
    %1060 = vsyncpa %s1059, 1

</llo_original>
